<compile_context>
chip_gen: v6e
topology: v6e:2x2x1
jax: 0.10.0
libtpu: 0.0.40
codegen_flags: <defaults>
</compile_context>

<pallas_src>
import functools

import jax
import jax.numpy as jnp
from jax.experimental import pallas as pl
from jax.experimental.pallas import tpu as pltpu

_LANE = 128
_SUBLANE = 8


def _round_up(x, m):
    return ((x + m - 1) // m) * m


def _choose_tm(batch, in_dim, n_pad, r_pad, x_bytes, w_bytes, out_bytes,
               budget_bytes):
    """Largest batch tile (multiple of 8, <=1024) fitting the VMEM budget with
    double-buffered x/out tiles plus resident weights."""
    resident = w_bytes * (in_dim * r_pad + r_pad * n_pad + r_pad + n_pad)
    tm = min(1024, _round_up(max(batch, 1), _SUBLANE))
    while tm > _SUBLANE:
        need = 2 * tm * (in_dim * x_bytes + n_pad * out_bytes) + resident
        if need <= budget_bytes:
            break
        tm = max(_SUBLANE, tm // 2)
    return tm


def _svd_linear_kernel(x_ref, u_ref, s_ref, v_ref, b_ref, o_ref, *,
                       compute_dtype):
    # First MXU matmul: [TM, K] @ [K, Rp] -> f32 [TM, Rp]
    x = x_ref[...].astype(compute_dtype)
    u = u_ref[...].astype(compute_dtype)
    y = jnp.dot(x, u, preferred_element_type=jnp.float32)
    # Column scale by |S| in f32 on the VPU (kept in-kernel; free under slack).
    y = y * jnp.abs(s_ref[...].astype(jnp.float32))          # s_ref is [1, Rp]
    # Second MXU matmul: [TM, Rp] @ [Rp, Np] -> f32 [TM, Np]
    v = v_ref[...].astype(compute_dtype)
    y = jnp.dot(y.astype(compute_dtype), v, preferred_element_type=jnp.float32)
    # Bias add (broadcast over rows), then lane-dense store.
    y = y + b_ref[...].astype(jnp.float32)                   # b_ref is [1, Np]
    o_ref[...] = y.astype(o_ref.dtype)


def prepare_svd_params(U, S, V, bias=None, *, param_dtype=None):
    """One-time padding of rank / output_dim up to lane (128) multiples.

    Zero padding is exact: extra U columns / V rows / S entries contribute 0.
    Optionally casts the (padded) parameters to `param_dtype` (e.g. bf16).
    Returns (U_p, S_p, V_p, bias_p, output_dim).
    """
    in_dim, r = U.shape
    out_dim = V.shape[1]
    r_p = _round_up(r, _LANE)
    n_p = _round_up(out_dim, _LANE)
    dt = param_dtype if param_dtype is not None else U.dtype

    U_p = jnp.pad(U, ((0, 0), (0, r_p - r))).astype(dt)
    S_p = jnp.pad(S.reshape(1, r), ((0, 0), (0, r_p - r))).astype(dt)
    V_p = jnp.pad(V, ((0, r_p - r), (0, n_p - out_dim))).astype(dt)
    if bias is None:
        b_p = jnp.zeros((1, n_p), dt)
    else:
        b_p = jnp.pad(bias.reshape(1, out_dim),
                      ((0, 0), (0, n_p - out_dim))).astype(dt)
    return U_p, S_p, V_p, b_p, out_dim


def svd_linear(x, U_p, S_p, V_p, b_p, output_dim, *,
               compute_dtype=jnp.bfloat16, tm=None,
               vmem_budget_bytes=24 * 1024 * 1024):
    """x: [..., input_dim] -> [..., output_dim] using padded params from
    prepare_svd_params()."""
    orig_shape = x.shape
    in_dim, r_p = U_p.shape
    n_p = V_p.shape[1]
    assert x.shape[-1] == in_dim

    x2d = x.reshape(-1, in_dim)
    B = x2d.shape[0]

    x_bytes = x2d.dtype.itemsize
    w_bytes = U_p.dtype.itemsize
    out_bytes = x2d.dtype.itemsize

    if tm is None:
        tm = _choose_tm(B, in_dim, n_p, r_p, x_bytes, w_bytes, out_bytes,
                        vmem_budget_bytes)
    tm = max(_SUBLANE, _round_up(min(tm, _round_up(B, _SUBLANE)), _SUBLANE))

    B_pad = _round_up(B, tm)
    if B_pad != B:
        x2d = jnp.pad(x2d, ((0, B_pad - B), (0, 0)))

    grid = (B_pad // tm,)
    kernel = functools.partial(_svd_linear_kernel, compute_dtype=compute_dtype)

    out = pl.pallas_call(
        kernel,
        out_shape=jax.ShapeDtypeStruct((B_pad, n_p), x.dtype),
        grid=grid,
        in_specs=[
            pl.BlockSpec((tm, in_dim), lambda i: (i, 0)),    # x: streamed tiles
            pl.BlockSpec((in_dim, r_p), lambda i: (0, 0)),   # U: VMEM-resident
            pl.BlockSpec((1, r_p), lambda i: (0, 0)),        # |S| row: resident
            pl.BlockSpec((r_p, n_p), lambda i: (0, 0)),      # V: VMEM-resident
            pl.BlockSpec((1, n_p), lambda i: (0, 0)),        # bias row: resident
        ],
        out_specs=pl.BlockSpec((tm, n_p), lambda i: (i, 0)),
        compiler_params=pltpu.CompilerParams(
            dimension_semantics=("parallel",),
            vmem_limit_bytes=32 * 1024 * 1024,
        ),
    )(x2d, U_p, S_p, V_p, b_p)

    out = out[:B, :output_dim]
    return out.reshape(orig_shape[:-1] + (output_dim,))


def init_params(key, input_dim, output_dim, rank=None, bias=True,
                dtype=jnp.float32):
    """Deterministic parameter init matching the PyTorch module's __init__."""
    if rank is not None and rank < min(input_dim, output_dim):
        r = rank
    else:
        r = min(input_dim, output_dim)
    ku, kv, ks = jax.random.split(key, 3)
    # xavier_normal_: std = sqrt(2 / (fan_in + fan_out))
    std_u = (2.0 / (input_dim + r)) ** 0.5
    std_v = (2.0 / (r + output_dim)) ** 0.5
    U = (jax.random.normal(ku, (input_dim, r)) * std_u).astype(dtype)
    V = (jax.random.normal(kv, (r, output_dim)) * std_v).astype(dtype)
    S = jax.random.uniform(ks, (r,)).astype(dtype)       # uniform_() -> U[0,1)
    b = jnp.zeros((output_dim,), dtype) if bias else None
    return U, S, V, b


def svd_linear_ref(x, U, S, V, bias):
    """Pure-JAX reference for correctness checking."""
    y = x @ U
    y = y * jnp.abs(S)
    y = y @ V
    if bias is not None:
        y = y + bias
    return y


if __name__ == "__main__":
    key = jax.random.PRNGKey(0)
    k_x, k_p = jax.random.split(key)

    input_dim, output_dim, rank = 32, 64, 16
    # 3-D input with a batch count (14 rows) that is NOT a multiple of the
    # tile, exercising reshape + batch padding + grid + output slicing.
    x = jax.random.normal(k_x, (2, 7, input_dim), dtype=jnp.float32)

    U, S, V, b = init_params(k_p, input_dim, output_dim, rank=rank, bias=True)
    ref = svd_linear_ref(x, U, S, V, b)

    # 1) f32-operand path, small tile (tm=8) to exercise a multi-step grid.
    Up, Sp, Vp, bp, odim = prepare_svd_params(U, S, V, b)
    out_f32 = jax.block_until_ready(
        svd_linear(x, Up, Sp, Vp, bp, odim, compute_dtype=jnp.float32, tm=8))
    assert out_f32.shape == ref.shape
    assert jnp.allclose(out_f32, ref, atol=1e-5, rtol=1e-5), "f32 mismatch"

    # 2) bf16-operand path (halved HBM traffic, f32 MXU accumulation).
    Up16, Sp16, Vp16, bp16, odim = prepare_svd_params(
        U, S, V, b, param_dtype=jnp.bfloat16)
    out_bf16 = jax.block_until_ready(
        svd_linear(x, Up16, Sp16, Vp16, bp16, odim,
                   compute_dtype=jnp.bfloat16))
    assert out_bf16.shape == ref.shape
    assert jnp.allclose(out_bf16, ref, atol=2e-2, rtol=2e-2), "bf16 mismatch"

    # 3) bias=None path.
    Upn, Spn, Vpn, bpn, odim = prepare_svd_params(U, S, V, None)
    out_nb = jax.block_until_ready(
        svd_linear(x, Upn, Spn, Vpn, bpn, odim, compute_dtype=jnp.float32))
    assert jnp.allclose(out_nb, svd_linear_ref(x, U, S, V, None),
                        atol=1e-5, rtol=1e-5), "no-bias mismatch"

    print("KERNEL_OK")
</pallas_src>

<mosaic_0001>
module attributes {stable_mosaic.version = 11 : i64} {
  func.func @_svd_linear_kernel(%arg0: i32, %arg1: memref<8x32xf32, #tpu.memory_space<vmem>>, %arg2: memref<32x128xf32, #tpu.memory_space<vmem>>, %arg3: memref<1x128xf32, #tpu.memory_space<vmem>>, %arg4: memref<128x128xf32, #tpu.memory_space<vmem>>, %arg5: memref<1x128xf32, #tpu.memory_space<vmem>>, %arg6: memref<8x128xf32, #tpu.memory_space<vmem>>) attributes {dimension_semantics = [#tpu.dimension_semantics<parallel>], iteration_bounds = array<i64: 2>, scalar_prefetch = 0 : i64, scratch_operands = 0 : i64, tpu.core_type = #tpu.core_type<tc>, window_params = [{transform_indices = @transform_0, window_bounds = array<i64: 8, 32>}, {pipeline_mode = #tpu.pipeline_mode<synchronous>, transform_indices = @transform_1, window_bounds = array<i64: 32, 128>}, {pipeline_mode = #tpu.pipeline_mode<synchronous>, transform_indices = @transform_2, window_bounds = array<i64: 1, 128>}, {pipeline_mode = #tpu.pipeline_mode<synchronous>, transform_indices = @transform_3, window_bounds = array<i64: 128, 128>}, {pipeline_mode = #tpu.pipeline_mode<synchronous>, transform_indices = @transform_4, window_bounds = array<i64: 1, 128>}, {transform_indices = @transform_5, window_bounds = array<i64: 8, 128>}]} {
    %c0 = arith.constant 0 : index
    %c0_0 = arith.constant 0 : index
    %0 = vector.load %arg1[%c0, %c0_0] : memref<8x32xf32, #tpu.memory_space<vmem>>, vector<8x32xf32>
    %c0_1 = arith.constant 0 : index
    %c0_2 = arith.constant 0 : index
    %1 = vector.load %arg2[%c0_1, %c0_2] : memref<32x128xf32, #tpu.memory_space<vmem>>, vector<32x128xf32>
    %cst = arith.constant dense<0.000000e+00> : vector<8x128xf32>
    %2 = tpu.matmul %0, %1, %cst {dimension_numbers = #tpu.dot_dimension_numbers<[1], [0], [0], [1], [0, 0, 1, 1], [], []>} : vector<8x32xf32>, vector<32x128xf32>, vector<8x128xf32> -> vector<8x128xf32>
    %c0_3 = arith.constant 0 : index
    %c0_4 = arith.constant 0 : index
    %3 = vector.load %arg3[%c0_3, %c0_4] : memref<1x128xf32, #tpu.memory_space<vmem>>, vector<1x128xf32>
    %4 = math.absf %3 : vector<1x128xf32>
    %5 = vector.broadcast %4 : vector<1x128xf32> to vector<8x128xf32>
    %6 = arith.mulf %2, %5 : vector<8x128xf32>
    %c0_5 = arith.constant 0 : index
    %c0_6 = arith.constant 0 : index
    %7 = vector.load %arg4[%c0_5, %c0_6] : memref<128x128xf32, #tpu.memory_space<vmem>>, vector<128x128xf32>
    %cst_7 = arith.constant dense<0.000000e+00> : vector<8x128xf32>
    %8 = tpu.matmul %6, %7, %cst_7 {dimension_numbers = #tpu.dot_dimension_numbers<[1], [0], [0], [1], [0, 0, 1, 1], [], []>} : vector<8x128xf32>, vector<128x128xf32>, vector<8x128xf32> -> vector<8x128xf32>
    %c0_8 = arith.constant 0 : index
    %c0_9 = arith.constant 0 : index
    %9 = vector.load %arg5[%c0_8, %c0_9] : memref<1x128xf32, #tpu.memory_space<vmem>>, vector<1x128xf32>
    %10 = vector.broadcast %9 : vector<1x128xf32> to vector<8x128xf32>
    %11 = arith.addf %8, %10 : vector<8x128xf32>
    %c0_10 = arith.constant 0 : index
    %c0_11 = arith.constant 0 : index
    %12 = vector.load %arg6[%c0_10, %c0_11] : memref<8x128xf32, #tpu.memory_space<vmem>>, vector<8x128xf32>
    tpu.vector_store %arg6[%c0_10, %c0_11], %11 {strides = array<i32>} : memref<8x128xf32, #tpu.memory_space<vmem>>, vector<8x128xf32>,
    return
  }
  func.func @transform_0(%arg0: i32) -> (i32, i32) {
    %c0_i32 = arith.constant 0 : i32
    %c0_i32_0 = arith.constant 0 : i32
    return %arg0, %c0_i32 : i32, i32
  }
  func.func @transform_1(%arg0: i32) -> (i32, i32) {
    %c0_i32 = arith.constant 0 : i32
    %c0_i32_0 = arith.constant 0 : i32
    %c0_i32_1 = arith.constant 0 : i32
    return %c0_i32, %c0_i32_0 : i32, i32
  }
  func.func @transform_2(%arg0: i32) -> (i32, i32) {
    %c0_i32 = arith.constant 0 : i32
    %c0_i32_0 = arith.constant 0 : i32
    %c0_i32_1 = arith.constant 0 : i32
    return %c0_i32, %c0_i32_0 : i32, i32
  }
  func.func @transform_3(%arg0: i32) -> (i32, i32) {
    %c0_i32 = arith.constant 0 : i32
    %c0_i32_0 = arith.constant 0 : i32
    %c0_i32_1 = arith.constant 0 : i32
    return %c0_i32, %c0_i32_0 : i32, i32
  }
  func.func @transform_4(%arg0: i32) -> (i32, i32) {
    %c0_i32 = arith.constant 0 : i32
    %c0_i32_0 = arith.constant 0 : i32
    %c0_i32_1 = arith.constant 0 : i32
    return %c0_i32, %c0_i32_0 : i32, i32
  }
  func.func @transform_5(%arg0: i32) -> (i32, i32) {
    %c0_i32 = arith.constant 0 : i32
    %c0_i32_0 = arith.constant 0 : i32
    return %arg0, %c0_i32 : i32, i32
  }
}

</mosaic_0001>

<llo_original>
// kernel: tpu_custom_call.1
$region0: #{tpu_custom_call.1}
  #allocation0 [shape = 'u32[]', space=smem, size = 0x4, offset = 0x4, fixed_abs, tag = 'smem constant byte address 0x4 - core index']
  #allocation1 [shape = 'u32[144,128]{1,0:T(1,128)}', space=vmem, size = 0x12000, scoped, tag = 'internal scratch']
  %s0 = inlined_call_operand.hbm [shape: f32[16,32], index: 0, kind: input, shape index: {}]
  %s1 = inlined_call_operand.hbm [shape: f32[32,128], index: 1, kind: input, shape index: {}]
  %s2 = inlined_call_operand.vmem [shape: f32[1,128], index: 2, kind: input, shape index: {}]
  %s3 = inlined_call_operand.hbm [shape: f32[128,128], index: 3, kind: input, shape index: {}]
  %s4 = inlined_call_operand.vmem [shape: f32[1,128], index: 4, kind: input, shape index: {}]
  %s5 = inlined_call_operand.hbm [shape: f32[16,128], index: 5, kind: output, shape index: {}]
  %s6 = sld [smem:[#allocation0]]
  $region65: #{tpu_custom_call.1} parent=0
    _
  %s8 = ssub.s32 1, %s6
  %s9 = scalar_select 0, %s8, %s6
  $region1: #{tpu_custom_call.1} parent=0
    #allocation2 [shape = 'u8[8192]{0}', space=vmem, size = 0x2000, scoped, tag = 'input window, operand 0']
    #allocation3 [shape = 's32[2]{0}', space=sflag, size = 0x8, scoped, tag = 'scoped memory for tpu_custom_call.1']
    #allocation4 [shape = 's32[2]{0}', space=sflag, size = 0x8, scoped, tag = 'scoped memory for tpu_custom_call.1']
    #allocation5 [shape = 'u8[16384]{0}', space=vmem, size = 0x4000, scoped, tag = 'input window, operand 1, single buffered']
    #allocation6 [shape = 's32[1]{0}', space=sflag, size = 0x4, scoped, tag = 'scoped memory for tpu_custom_call.1']
    #allocation7 [shape = 'u8[65536]{0}', space=vmem, size = 0x10000, scoped, tag = 'input window, operand 3, single buffered']
    #allocation8 [shape = 'u8[8192]{0}', space=vmem, size = 0x2000, scoped, tag = 'output window, operand 0']
    %10 = vsyncpa [#allocation3], 0
    %s11 = scalar_lea.sflag [#allocation3], 1
    %12 = vsyncpa %s11, 0
    %13 = vsyncpa [#allocation6], 0
    %14 = vsyncpa [#allocation4], 0
    %s15 = scalar_lea.sflag [#allocation4], 1
    %16 = vsyncpa %s15, 0
    loop: start=0, step=1, limit=4
    $region2: #{tpu_custom_call.1} parent=1 // loop_pre_header
      _
    $region3: #{tpu_custom_call.1} parent=1 // loop_header
      %s18 = sphi 0, %s22
      %p19 = scmp.ge.s32.totalorder %s18, 4
      %s28 = sphi 0, %s30
      %s31 = sphi 0, %s28
      %s32 = sphi 0, %s31
      %s48 = sphi 0, %s32
      %s52 = sphi 0, %s52
      %s54 = sphi 0, %s52
      %s55 = sphi 0, %s54
      %s69 = sphi 0, %s55
      %s73 = sphi 0, %s73
      %s75 = sphi 0, %s73
      %s76 = sphi 0, %s75
      %s90 = sphi 0, %s76
      %s94 = sphi 0, %s94
      %s96 = sphi 0, %s94
      %s97 = sphi 0, %s96
      %s111 = sphi 0, %s97
      %s115 = sphi 0, %s115
      %s117 = sphi 0, %s115
      %s118 = sphi 0, %s117
      %s132 = sphi 0, %s118
      %s138 = sphi 0, %s140
      %s141 = sphi 0, %s138
      %s142 = sphi 0, %s141
      %s158 = sphi 0, %s142
    $region4: #{tpu_custom_call.1} parent=1 // loop_header_branch
      %21 = sbr.rel (%p19) target = $region8
    $region5: #{tpu_custom_call.1} parent=1 // loop_body
      %s23 = ssub.s32 %s18, 1
      %s24 = ssub.s32 %s18, 2
      %s25 = sadd.s32 %s18, 1
      %s26 = ssub.s32 %s18, %s25
      %p27 = scmp.eq.s32.totalorder %s26, 0
      %s29 = sadd.s32 %s28, 1
      %s30 = scalar_select %p27, %s28, %s29
      %p33 = pneg %p27
      %p34 = scmp.eq.s32.totalorder %s18, 1
      %p35 = por %p33, %p34
      %p36 = scmp.ne.s32.totalorder %s28, %s31
      %p37 = scmp.eq.s32.totalorder %s18, 0
      %p38 = por %p36, %p37
      %p39 = scmp.ne.s32.totalorder %s28, %s31
      %p40 = scmp.eq.s32.totalorder %s23, 1
      %p41 = por %p39, %p40
      %p42 = scmp.ne.s32.totalorder %s31, %s32
      %p43 = scmp.eq.s32.totalorder %s23, 0
      %p44 = por %p42, %p43
      %p45 = scmp.ne.s32.totalorder %s31, %s32
      %p46 = scmp.eq.s32.totalorder %s24, 1
      %p47 = por %p45, %p46
      %p49 = scmp.ne.s32.totalorder %s32, %s48
      %p50 = scmp.eq.s32.totalorder %s24, 0
      %p51 = por %p49, %p50
      %s53 = sadd.s32 %s52, 1
      %p56 = scmp.eq.s32.totalorder %s18, 1
      %p57 = scmp.ne.s32.totalorder %s52, %s54
      %p58 = scmp.eq.s32.totalorder %s18, 0
      %p59 = por %p57, %p58
      %p60 = scmp.ne.s32.totalorder %s52, %s54
      %p61 = scmp.eq.s32.totalorder %s23, 1
      %p62 = por %p60, %p61
      %p63 = scmp.ne.s32.totalorder %s54, %s55
      %p64 = scmp.eq.s32.totalorder %s23, 0
      %p65 = por %p63, %p64
      %p66 = scmp.ne.s32.totalorder %s54, %s55
      %p67 = scmp.eq.s32.totalorder %s24, 1
      %p68 = por %p66, %p67
      %p70 = scmp.ne.s32.totalorder %s55, %s69
      %p71 = scmp.eq.s32.totalorder %s24, 0
      %p72 = por %p70, %p71
      %s74 = sadd.s32 %s73, 1
      %p77 = scmp.eq.s32.totalorder %s18, 1
      %p78 = scmp.ne.s32.totalorder %s73, %s75
      %p79 = scmp.eq.s32.totalorder %s18, 0
      %p80 = por %p78, %p79
      %p81 = scmp.ne.s32.totalorder %s73, %s75
      %p82 = scmp.eq.s32.totalorder %s23, 1
      %p83 = por %p81, %p82
      %p84 = scmp.ne.s32.totalorder %s75, %s76
      %p85 = scmp.eq.s32.totalorder %s23, 0
      %p86 = por %p84, %p85
      %p87 = scmp.ne.s32.totalorder %s75, %s76
      %p88 = scmp.eq.s32.totalorder %s24, 1
      %p89 = por %p87, %p88
      %p91 = scmp.ne.s32.totalorder %s76, %s90
      %p92 = scmp.eq.s32.totalorder %s24, 0
      %p93 = por %p91, %p92
      %s95 = sadd.s32 %s94, 1
      %p98 = scmp.eq.s32.totalorder %s18, 1
      %p99 = scmp.ne.s32.totalorder %s94, %s96
      %p100 = scmp.eq.s32.totalorder %s18, 0
      %p101 = por %p99, %p100
      %p102 = scmp.ne.s32.totalorder %s94, %s96
      %p103 = scmp.eq.s32.totalorder %s23, 1
      %p104 = por %p102, %p103
      %p105 = scmp.ne.s32.totalorder %s96, %s97
      %p106 = scmp.eq.s32.totalorder %s23, 0
      %p107 = por %p105, %p106
      %p108 = scmp.ne.s32.totalorder %s96, %s97
      %p109 = scmp.eq.s32.totalorder %s24, 1
      %p110 = por %p108, %p109
      %p112 = scmp.ne.s32.totalorder %s97, %s111
      %p113 = scmp.eq.s32.totalorder %s24, 0
      %p114 = por %p112, %p113
      %s116 = sadd.s32 %s115, 1
      %p119 = scmp.eq.s32.totalorder %s18, 1
      %p120 = scmp.ne.s32.totalorder %s115, %s117
      %p121 = scmp.eq.s32.totalorder %s18, 0
      %p122 = por %p120, %p121
      %p123 = scmp.ne.s32.totalorder %s115, %s117
      %p124 = scmp.eq.s32.totalorder %s23, 1
      %p125 = por %p123, %p124
      %p126 = scmp.ne.s32.totalorder %s117, %s118
      %p127 = scmp.eq.s32.totalorder %s23, 0
      %p128 = por %p126, %p127
      %p129 = scmp.ne.s32.totalorder %s117, %s118
      %p130 = scmp.eq.s32.totalorder %s24, 1
      %p131 = por %p129, %p130
      %p133 = scmp.ne.s32.totalorder %s118, %s132
      %p134 = scmp.eq.s32.totalorder %s24, 0
      %p135 = por %p133, %p134
      %s136 = ssub.s32 %s18, %s25
      %p137 = scmp.eq.s32.totalorder %s136, 0
      %s139 = sadd.s32 %s138, 1
      %s140 = scalar_select %p137, %s138, %s139
      %p143 = pneg %p137
      %p144 = scmp.eq.s32.totalorder %s18, 1
      %p145 = por %p143, %p144
      %p146 = scmp.ne.s32.totalorder %s138, %s141
      %p147 = scmp.eq.s32.totalorder %s18, 0
      %p148 = por %p146, %p147
      %p149 = scmp.ne.s32.totalorder %s138, %s141
      %p150 = scmp.eq.s32.totalorder %s23, 1
      %p151 = por %p149, %p150
      %p152 = scmp.ne.s32.totalorder %s141, %s142
      %p153 = scmp.eq.s32.totalorder %s23, 0
      %p154 = por %p152, %p153
      %p155 = scmp.ne.s32.totalorder %s141, %s142
      %p156 = scmp.eq.s32.totalorder %s24, 1
      %p157 = por %p155, %p156
      %p159 = scmp.ne.s32.totalorder %s142, %s158
      %p160 = scmp.eq.s32.totalorder %s24, 0
      %p161 = por %p159, %p160
      %p162 = scmp.le.s32.totalorder 1, %s18
      %p163 = scmp.lt.s32.totalorder %s18, 3
      %p164 = pnand %p162, %p163
      %p165 = pneg %p164
      // Predicated region
      $region9: #{tpu_custom_call.1} parent=5 // pred_check
        _
      $region10: #{tpu_custom_call.1} parent=5 // pred_check_branch
        %167 = sbr.rel (%p164) target = $region12
      $region11: #{tpu_custom_call.1} parent=5 // pred_region
        %s168 = ssub.s32 %s18, 1
        // Predicated region
        $region13: #{tpu_custom_call.1} parent=11 // pred_check
          %p169 = pneg %p65
        $region14: #{tpu_custom_call.1} parent=11 // pred_check_branch
          %171 = sbr.rel (%p169) target = $region16
        $region15: #{tpu_custom_call.1} parent=11 // pred_region
          %s173 = ssub.s32 512, 512
          %174 = vsyncadd [#allocation6], %s173
          %s175 = sshll.u32 [#allocation5], 4
          %s176 = int_to_ptr.vmem [resolvable:$true] %s175
          %181 = dma.hbm_to_vmem [thread:$0]  %s1, 512, %s176, [#allocation6], 128, 128, 8
        $region16: #{tpu_custom_call.1} parent=11 // pred_fallthru
          _
        // Predicated region
        $region17: #{tpu_custom_call.1} parent=11 // pred_check
          %p182 = pneg %p86
        $region18: #{tpu_custom_call.1} parent=11 // pred_check_branch
          %184 = sbr.rel (%p182) target = $region20
        $region19: #{tpu_custom_call.1} parent=11 // pred_region
          _
        $region20: #{tpu_custom_call.1} parent=11 // pred_fallthru
          _
        // Predicated region
        $region21: #{tpu_custom_call.1} parent=11 // pred_check
          %p185 = pneg %p107
        $region22: #{tpu_custom_call.1} parent=11 // pred_check_branch
          %187 = sbr.rel (%p185) target = $region24
        $region23: #{tpu_custom_call.1} parent=11 // pred_region
          %s189 = ssub.s32 2048, 2048
          %190 = vsyncadd [#allocation6], %s189
          %s191 = sshll.u32 [#allocation7], 4
          %s192 = int_to_ptr.vmem [resolvable:$true] %s191
          %197 = dma.hbm_to_vmem [thread:$0]  %s3, 2048, %s192, [#allocation6], 128, 128, 8
        $region24: #{tpu_custom_call.1} parent=11 // pred_fallthru
          _
        // Predicated region
        $region25: #{tpu_custom_call.1} parent=11 // pred_check
          %p198 = pneg %p128
        $region26: #{tpu_custom_call.1} parent=11 // pred_check_branch
          %200 = sbr.rel (%p198) target = $region28
        $region27: #{tpu_custom_call.1} parent=11 // pred_region
          _
        $region28: #{tpu_custom_call.1} parent=11 // pred_fallthru
          _
      $region12: #{tpu_custom_call.1} parent=5 // pred_fallthru
        _
      %p201 = scmp.lt.s32.totalorder %s18, 2
      // Predicated region
      $region29: #{tpu_custom_call.1} parent=5 // pred_check
        %p202 = pneg %p201
      $region30: #{tpu_custom_call.1} parent=5 // pred_check_branch
        %204 = sbr.rel (%p202) target = $region32
      $region31: #{tpu_custom_call.1} parent=5 // pred_region
        // Predicated region
        $region33: #{tpu_custom_call.1} parent=31 // pred_check
          %p205 = pneg %p38
        $region34: #{tpu_custom_call.1} parent=31 // pred_check_branch
          %207 = sbr.rel (%p205) target = $region36
        $region35: #{tpu_custom_call.1} parent=31 // pred_region
          %s208 = sand.u32 %s28, 1
          %s209 = scalar_lea.sflag [#allocation3], %s208
          %s210 = sand.u32 %s28, 1
          %s211 = smul.addr %s210, 8
          %s212 = scalar_lea.vmem [#allocation2], %s211
          %s214 = ssub.s32 128, 128
          %215 = vsyncadd %s209, %s214
          %s216 = smul.addr %s18, 128
          %s217 = scalar_lea.hbm %s0, %s216
          %s219 = sshll.u32 %s212, 4
          %s220 = int_to_ptr.vmem [resolvable:$true] %s219
          %222 = dma.hbm_to_vmem [thread:$0]  %s217, 128, %s220, %s209
        $region36: #{tpu_custom_call.1} parent=31 // pred_fallthru
          _
      $region32: #{tpu_custom_call.1} parent=5 // pred_fallthru
        _
      %p223 = scmp.le.s32.totalorder 1, %s18
      %p224 = scmp.lt.s32.totalorder %s18, 3
      %p225 = pnand %p223, %p224
      %p226 = pneg %p225
      // Predicated region
      $region37: #{tpu_custom_call.1} parent=5 // pred_check
        _
      $region38: #{tpu_custom_call.1} parent=5 // pred_check_branch
        %228 = sbr.rel (%p225) target = $region40
      $region39: #{tpu_custom_call.1} parent=5 // pred_region
        %s229 = ssub.s32 %s18, 1
        %s230 = sand.u32 %s31, 1
        %s231 = scalar_lea.sflag [#allocation3], %s230
        %s232 = sand.u32 %s31, 1
        %s233 = smul.addr %s232, 8
        %s234 = scalar_lea.vmem [#allocation2], %s233
        // Predicated region
        $region41: #{tpu_custom_call.1} parent=39 // pred_check
          %p235 = pneg %p44
        $region42: #{tpu_custom_call.1} parent=39 // pred_check_branch
          %237 = sbr.rel (%p235) target = $region44
        $region43: #{tpu_custom_call.1} parent=39 // pred_region
          %238 = dma.done %s231, 128
        $region44: #{tpu_custom_call.1} parent=39 // pred_fallthru
          _
        // Predicated region
        $region45: #{tpu_custom_call.1} parent=39 // pred_check
          %p239 = pneg %p65
        $region46: #{tpu_custom_call.1} parent=39 // pred_check_branch
          %241 = sbr.rel (%p239) target = $region48
        $region47: #{tpu_custom_call.1} parent=39 // pred_region
          %242 = dma.done [#allocation6], 512
        $region48: #{tpu_custom_call.1} parent=39 // pred_fallthru
          _
        // Predicated region
        $region49: #{tpu_custom_call.1} parent=39 // pred_check
          %p243 = pneg %p107
        $region50: #{tpu_custom_call.1} parent=39 // pred_check_branch
          %245 = sbr.rel (%p243) target = $region52
        $region51: #{tpu_custom_call.1} parent=39 // pred_region
          %246 = dma.done [#allocation6], 2048
        $region52: #{tpu_custom_call.1} parent=39 // pred_fallthru
          _
        %s247 = sand.u32 %s31, 1
        %s248 = scalar_lea.sflag [#allocation3], %s247
        %s249 = sand.u32 %s31, 1
        %s250 = smul.addr %s249, 8
        %s251 = scalar_lea.vmem [#allocation2], %s250
        %p252 = pneg %p44
        %p253 = pneg %p41
        %p254 = pneg %p65
        %p255 = pneg %p62
        %p256 = pneg %p86
        %p257 = pneg %p83
        %p258 = pneg %p107
        %p259 = pneg %p104
        %p260 = pneg %p128
        %p261 = pneg %p125
        %p262 = pneg %p154
        %p263 = pneg %p151
        %s264 = sand.u32 %s141, 1
        %s265 = scalar_lea.sflag [#allocation4], %s264
        %s266 = sand.u32 %s141, 1
        %s267 = smul.addr %s266, 8
        %s268 = scalar_lea.vmem [#allocation8], %s267
        %v269 = vld [vmem:[%s234] sm:$0xff]
        %v270 = vld [vmem:[#allocation5] sm:$0xff]
        %v271 = vld [vmem:[#allocation5 + $0x8] sm:$0xff]
        %v272 = vld [vmem:[#allocation5 + $0x10] sm:$0xff]
        %v273 = vld [vmem:[#allocation5 + $0x18] sm:$0xff]
        %vm274 = vcmask 261120
        %v276 = vsel %vm274, %v269, 0
        %278 = vmatprep.subr.mxu0 0.0
        %279 = vmatpush1.msra.mxu0 0.0
        %280 = vmatprep.subr.mxu0 0.0
        %281 = vmatpush1.msra.mxu0 0.0
        %282 = vmatprep.subr.mxu0 0.0
        %283 = vmatpush1.msra.mxu0 0.0
        %284 = vmatprep.subr.mxu0 0.0
        %285 = vmatpush1.msra.mxu0 0.0
        %286 = vmatprep.subr.mxu0 0.0
        %287 = vmatpush1.msra.mxu0 0.0
        %288 = vmatprep.subr.mxu0 0.0
        %289 = vmatpush1.msra.mxu0 0.0
        %290 = vmatprep.subr.mxu0 0.0
        %291 = vmatpush1.msra.mxu0 0.0
        %292 = vmatprep.subr.mxu0 0.0
        %293 = vmatpush1.msra.mxu0 0.0
        %294 = vmatprep.subr.mxu0 0.0
        %295 = vmatpush1.msra.mxu0 0.0
        %296 = vmatprep.subr.mxu0 0.0
        %297 = vmatpush1.msra.mxu0 0.0
        %298 = vmatprep.subr.mxu0 0.0
        %299 = vmatpush1.msra.mxu0 0.0
        %300 = vmatprep.subr.mxu0 0.0
        %301 = vmatpush1.msra.mxu0 0.0
        %302 = vmatprep.subr.mxu0 0.0
        %303 = vmatpush1.msra.mxu0 %v273
        %304 = vmatprep.subr.mxu0 0.0
        %305 = vmatpush1.msra.mxu0 %v272
        %306 = vmatprep.subr.mxu0 0.0
        %307 = vmatpush1.msra.mxu0 %v271
        %308 = vmatprep.subr.mxu0 0.0
        %309 = vmatpush1.msra.mxu0 %v270
        %310 = vmatprep.subr.mxu0 0.0
        %311 = vmatpush2.msra.mxu0 0.0
        %312 = vmatprep.subr.mxu0 0.0
        %313 = vmatpush2.msra.mxu0 0.0
        %314 = vmatprep.subr.mxu0 0.0
        %315 = vmatpush2.msra.mxu0 0.0
        %316 = vmatprep.subr.mxu0 0.0
        %317 = vmatpush2.msra.mxu0 0.0
        %318 = vmatprep.subr.mxu0 0.0
        %319 = vmatpush2.msra.mxu0 0.0
        %320 = vmatprep.subr.mxu0 0.0
        %321 = vmatpush2.msra.mxu0 0.0
        %322 = vmatprep.subr.mxu0 0.0
        %323 = vmatpush2.msra.mxu0 0.0
        %324 = vmatprep.subr.mxu0 0.0
        %325 = vmatpush2.msra.mxu0 0.0
        %326 = vmatprep.subr.mxu0 0.0
        %327 = vmatpush2.msra.mxu0 0.0
        %328 = vmatprep.subr.mxu0 0.0
        %329 = vmatpush2.msra.mxu0 0.0
        %330 = vmatprep.subr.mxu0 0.0
        %331 = vmatpush2.msra.mxu0 0.0
        %332 = vmatprep.subr.mxu0 0.0
        %333 = vmatpush2.msra.mxu0 0.0
        %334 = vmatprep.subr.mxu0 0.0
        %335 = vmatpush2.msra.mxu0 0.0
        %336 = vmatprep.subr.mxu0 0.0
        %337 = vmatpush2.msra.mxu0 0.0
        %338 = vmatprep.subr.mxu0 0.0
        %339 = vmatpush2.msra.mxu0 0.0
        %340 = vmatprep.subr.mxu0 0.0
        %341 = vmatpush2.msra.mxu0 0.0
        %342 = vmatprep.mubr.f32.mxu0 0.0
        %343 = vmatmul.mubr.f32.gmra.mxu0 %v276
        %v344 = vpop.f32.mrf.mxu0
        %v345 = vadd.f32 0.0, %v344
        %v346 = vpop.f32.mrf.mxu0
        %347 = vdwg.mxu0
        %v348 = vld [vmem:[%s2] sm:$0x1]
        %v349 = vand.u32 2147483647, %v348
        %v351 = vlaneseq
        %v352 = vshrl.u32 %v351, 7
        %v353 = vsub.s32 0, %v352
        %v354 = vrot.slane %v349, %v353
        %v356 = vmul.f32 %v345, %v354
        %v357 = vld [vmem:[#allocation7] sm:$0xff]
        %v358 = vld [vmem:[#allocation7 + $0x8] sm:$0xff]
        %v359 = vld [vmem:[#allocation7 + $0x10] sm:$0xff]
        %v360 = vld [vmem:[#allocation7 + $0x18] sm:$0xff]
        %v361 = vld [vmem:[#allocation7 + $0x20] sm:$0xff]
        %v362 = vld [vmem:[#allocation7 + $0x28] sm:$0xff]
        %v363 = vld [vmem:[#allocation7 + $0x30] sm:$0xff]
        %v364 = vld [vmem:[#allocation7 + $0x38] sm:$0xff]
        %v365 = vld [vmem:[#allocation7 + $0x40] sm:$0xff]
        %v366 = vld [vmem:[#allocation7 + $0x48] sm:$0xff]
        %v367 = vld [vmem:[#allocation7 + $0x50] sm:$0xff]
        %v368 = vld [vmem:[#allocation7 + $0x58] sm:$0xff]
        %v369 = vld [vmem:[#allocation7 + $0x60] sm:$0xff]
        %v370 = vld [vmem:[#allocation7 + $0x68] sm:$0xff]
        %v371 = vld [vmem:[#allocation7 + $0x70] sm:$0xff]
        %v372 = vld [vmem:[#allocation7 + $0x78] sm:$0xff]
        %v373 = vld [vmem:[%s4] sm:$0x1]
        %v375 = vlaneseq
        %v376 = vshrl.u32 %v375, 7
        %v377 = vsub.s32 0, %v376
        %v378 = vrot.slane %v373, %v377
        %380 = vmatprep.subr.mxu0 0.0
        %381 = vmatpush1.msra.mxu0 %v372
        %382 = vmatprep.subr.mxu0 0.0
        %383 = vmatpush1.msra.mxu0 %v371
        %384 = vmatprep.subr.mxu0 0.0
        %385 = vmatpush1.msra.mxu0 %v370
        %386 = vmatprep.subr.mxu0 0.0
        %387 = vmatpush1.msra.mxu0 %v369
        %388 = vmatprep.subr.mxu0 0.0
        %389 = vmatpush1.msra.mxu0 %v368
        %390 = vmatprep.subr.mxu0 0.0
        %391 = vmatpush1.msra.mxu0 %v367
        %392 = vmatprep.subr.mxu0 0.0
        %393 = vmatpush1.msra.mxu0 %v366
        %394 = vmatprep.subr.mxu0 0.0
        %395 = vmatpush1.msra.mxu0 %v365
        %396 = vmatprep.subr.mxu0 0.0
        %397 = vmatpush1.msra.mxu0 %v364
        %398 = vmatprep.subr.mxu0 0.0
        %399 = vmatpush1.msra.mxu0 %v363
        %400 = vmatprep.subr.mxu0 0.0
        %401 = vmatpush1.msra.mxu0 %v362
        %402 = vmatprep.subr.mxu0 0.0
        %403 = vmatpush1.msra.mxu0 %v361
        %404 = vmatprep.subr.mxu0 0.0
        %405 = vmatpush1.msra.mxu0 %v360
        %406 = vmatprep.subr.mxu0 0.0
        %407 = vmatpush1.msra.mxu0 %v359
        %408 = vmatprep.subr.mxu0 0.0
        %409 = vmatpush1.msra.mxu0 %v358
        %410 = vmatprep.subr.mxu0 0.0
        %411 = vmatpush1.msra.mxu0 %v357
        %412 = vmatprep.subr.mxu0 0.0
        %413 = vmatpush2.msra.mxu0 0.0
        %414 = vmatprep.subr.mxu0 0.0
        %415 = vmatpush2.msra.mxu0 0.0
        %416 = vmatprep.subr.mxu0 0.0
        %417 = vmatpush2.msra.mxu0 0.0
        %418 = vmatprep.subr.mxu0 0.0
        %419 = vmatpush2.msra.mxu0 0.0
        %420 = vmatprep.subr.mxu0 0.0
        %421 = vmatpush2.msra.mxu0 0.0
        %422 = vmatprep.subr.mxu0 0.0
        %423 = vmatpush2.msra.mxu0 0.0
        %424 = vmatprep.subr.mxu0 0.0
        %425 = vmatpush2.msra.mxu0 0.0
        %426 = vmatprep.subr.mxu0 0.0
        %427 = vmatpush2.msra.mxu0 0.0
        %428 = vmatprep.subr.mxu0 0.0
        %429 = vmatpush2.msra.mxu0 0.0
        %430 = vmatprep.subr.mxu0 0.0
        %431 = vmatpush2.msra.mxu0 0.0
        %432 = vmatprep.subr.mxu0 0.0
        %433 = vmatpush2.msra.mxu0 0.0
        %434 = vmatprep.subr.mxu0 0.0
        %435 = vmatpush2.msra.mxu0 0.0
        %436 = vmatprep.subr.mxu0 0.0
        %437 = vmatpush2.msra.mxu0 0.0
        %438 = vmatprep.subr.mxu0 0.0
        %439 = vmatpush2.msra.mxu0 0.0
        %440 = vmatprep.subr.mxu0 0.0
        %441 = vmatpush2.msra.mxu0 0.0
        %442 = vmatprep.subr.mxu0 0.0
        %443 = vmatpush2.msra.mxu0 0.0
        %444 = vmatprep.mubr.f32.mxu0 0.0
        %445 = vmatmul.mubr.f32.gmra.mxu0 %v356
        %v446 = vpop.f32.mrf.mxu0
        %v447 = vadd.f32 %v378, %v446
        %v448 = vpop.f32.mrf.mxu0
        %449 = vdwg.mxu0
        %450 = vst [vmem:[%s268] sm:$0xff] %v447
        %s451 = sand.u32 %s141, 1
        %s452 = scalar_lea.sflag [#allocation4], %s451
        %s453 = sand.u32 %s141, 1
        %s454 = smul.addr %s453, 8
        %s455 = scalar_lea.vmem [#allocation8], %s454
        // Predicated region
        $region53: #{tpu_custom_call.1} parent=39 // pred_check
          %p456 = pneg %p151
        $region54: #{tpu_custom_call.1} parent=39 // pred_check_branch
          %458 = sbr.rel (%p456) target = $region56
        $region55: #{tpu_custom_call.1} parent=39 // pred_region
          %s460 = ssub.s32 128, 128
          %461 = vsyncadd %s452, %s460
          %s462 = smul.addr %s23, 128
          %s463 = scalar_lea.hbm %s5, %s462
          %s465 = sshll.u32 %s455, 4
          %s466 = int_to_ptr.vmem [resolvable:$true] %s465
          %468 = dma.vmem_to_hbm [thread:$0]  %s466, 128, %s463, %s452
        $region56: #{tpu_custom_call.1} parent=39 // pred_fallthru
          _
      $region40: #{tpu_custom_call.1} parent=5 // pred_fallthru
        _
      %p469 = scmp.le.s32.totalorder 2, %s18
      // Predicated region
      $region57: #{tpu_custom_call.1} parent=5 // pred_check
        %p470 = pneg %p469
      $region58: #{tpu_custom_call.1} parent=5 // pred_check_branch
        %472 = sbr.rel (%p470) target = $region60
      $region59: #{tpu_custom_call.1} parent=5 // pred_region
        %s473 = ssub.s32 %s18, 2
        // Predicated region
        $region61: #{tpu_custom_call.1} parent=59 // pred_check
          %p474 = pneg %p157
        $region62: #{tpu_custom_call.1} parent=59 // pred_check_branch
          %476 = sbr.rel (%p474) target = $region64
        $region63: #{tpu_custom_call.1} parent=59 // pred_region
          %s477 = sand.u32 %s142, 1
          %s478 = scalar_lea.sflag [#allocation4], %s477
          %s479 = sand.u32 %s142, 1
          %s480 = smul.addr %s479, 8
          %s481 = scalar_lea.vmem [#allocation8], %s480
          %482 = dma.done %s478, 128
        $region64: #{tpu_custom_call.1} parent=59 // pred_fallthru
          _
      $region60: #{tpu_custom_call.1} parent=5 // pred_fallthru
        _
    $region6: #{tpu_custom_call.1} parent=1 // loop_footer
      %s22 = sadd.s32 1, %s18
    $region7: #{tpu_custom_call.1} parent=1 // loop_footer_branch
      %17 = sbr.rel target = $region3
    $region8: #{tpu_custom_call.1} parent=1 // loop_exit
      _
    %483 = vsyncpa [#allocation3], 1
    %s484 = scalar_lea.sflag [#allocation3], 1
    %485 = vsyncpa %s484, 1
    %486 = vsyncpa [#allocation6], 1
    %487 = vsyncpa [#allocation4], 1
    %s488 = scalar_lea.sflag [#allocation4], 1
    %489 = vsyncpa %s488, 1

</llo_original>
